<compile_context>
chip_gen: v5e
topology: v5e:2x2
jax: 0.10.0
libtpu: 0.0.40
codegen_flags: <defaults>
</compile_context>

<pallas_src>
import jax
import jax.numpy as jnp
from jax import lax
from jax.experimental import pallas as pl
from jax.experimental.pallas import tpu as pltpu


def _lstm_fc_kernel(gx_ref, whh_ref, wfc_ref, bfc_ref, out_ref):
    # gx_ref:  (T, B, 4H) f32   -- precomputed x @ W_ih^T + (b_ih + b_hh)
    # whh_ref: (H, 4H)    bf16  -- recurrent weights, gate order [i, f, o, g]
    # wfc_ref: (H, C)     bf16
    # bfc_ref: (1, C)     f32
    # out_ref: (B, C)     f32
    T = gx_ref.shape[0]
    B = gx_ref.shape[1]
    H = whh_ref.shape[0]

    h0 = jnp.zeros((B, H), jnp.float32)
    c0 = jnp.zeros((B, H), jnp.float32)

    def step(t, carry):
        h, c = carry
        # Single MXU op on the serial chain: bf16 inputs, f32 accumulation.
        gates = gx_ref[t] + jnp.dot(
            h.astype(whh_ref.dtype), whh_ref[...],
            preferred_element_type=jnp.float32)          # (B, 4H)
        sig = jax.nn.sigmoid(gates[:, 0:3 * H])           # one EUP region: i,f,o
        i_g = sig[:, 0 * H:1 * H]
        f_g = sig[:, 1 * H:2 * H]
        o_g = sig[:, 2 * H:3 * H]
        g_g = jnp.tanh(gates[:, 3 * H:4 * H])             # one EUP region: g
        c_new = f_g * c + i_g * g_g
        h_new = o_g * jnp.tanh(c_new)
        return (h_new, c_new)

    # T is static and small -> fully unroll so adjacent steps can overlap.
    h_last, _ = lax.fori_loop(0, T, step, (h0, c0), unroll=True)

    out_ref[...] = (
        jnp.dot(h_last.astype(wfc_ref.dtype), wfc_ref[...],
                preferred_element_type=jnp.float32)
        + bfc_ref[...]
    ).astype(out_ref.dtype)


def fetch_olivetti_faces_forward(x, params):
    """x: (B, T, D_in) or (B, D_in) float32. Returns (B, num_classes)."""
    if x.ndim == 2:
        x = x[:, None, :]  # unsqueeze(1), matching the PyTorch forward
    B, T, _ = x.shape
    w_ih_t, w_hh_t, b, w_fc_t, b_fc = params
    C = w_fc_t.shape[1]

    # Pad batch to a full sublane multiple so vregs / stores are dense.
    B_pad = max(8, ((B + 7) // 8) * 8)
    if B_pad != B:
        x = jnp.pad(x, ((0, B_pad - B), (0, 0), (0, 0)))

    # Hoist the input projection (and bias) out of the recurrence: one matmul
    # for all timesteps, producing a time-major (T, B_pad, 4H) slab.  This also
    # replaces the explicit (B,T,D)->(T,B,D) transpose.
    gates_x = (
        jnp.einsum('btd,dg->tbg', x.astype(jnp.float32), w_ih_t,
                   preferred_element_type=jnp.float32)
        + b[None, :, :]
    )

    vmem = pl.BlockSpec(memory_space=pltpu.MemorySpace.VMEM)
    out = pl.pallas_call(
        _lstm_fc_kernel,
        out_shape=jax.ShapeDtypeStruct((B_pad, C), jnp.float32),
        in_specs=[vmem, vmem, vmem, vmem],
        out_specs=vmem,
        # TODO(synk): if B/T ever scale beyond toy sizes, add a batch grid
        # (dimension_semantics=('parallel',)) so tiles fit v7x's 64 MiB VMEM
        # and shard across its 2 TensorCores.
    )(gates_x, w_hh_t, w_fc_t, b_fc)
    return out[:B]


def init_params(key, input_size, hidden_size, num_classes):
    """Deterministic synthetic init (PyTorch-style uniform +/- 1/sqrt(H))."""
    H = hidden_size
    k = 1.0 / jnp.sqrt(jnp.float32(H))
    ks = jax.random.split(key, 6)
    w_ih = jax.random.uniform(ks[0], (4 * H, input_size), jnp.float32, -k, k)
    w_hh = jax.random.uniform(ks[1], (4 * H, H), jnp.float32, -k, k)
    b_ih = jax.random.uniform(ks[2], (4 * H,), jnp.float32, -k, k)
    b_hh = jax.random.uniform(ks[3], (4 * H,), jnp.float32, -k, k)
    w_fc = jax.random.uniform(ks[4], (num_classes, H), jnp.float32, -k, k)
    b_fc = jax.random.uniform(ks[5], (num_classes,), jnp.float32, -k, k)

    # Permute PyTorch gate order [i, f, g, o] -> [i, f, o, g] so the kernel
    # applies one contiguous sigmoid to [:, :3H] and one tanh to [:, 3H:].
    perm = jnp.concatenate([
        jnp.arange(0 * H, 1 * H),   # i
        jnp.arange(1 * H, 2 * H),   # f
        jnp.arange(3 * H, 4 * H),   # o
        jnp.arange(2 * H, 3 * H),   # g
    ])
    w_ih = w_ih[perm]
    w_hh = w_hh[perm]
    b = (b_ih + b_hh)[perm]

    return (
        w_ih.T,                           # (D_in, 4H) f32, cols = [i,f,o,g]
        w_hh.T.astype(jnp.bfloat16),      # (H, 4H)    bf16
        b[None, :],                       # (1, 4H)    f32 (b_ih + b_hh)
        w_fc.T.astype(jnp.bfloat16),      # (H, C)     bf16
        b_fc[None, :],                    # (1, C)     f32
    )


def _reference_forward(x, params):
    """Pure-JAX reference of the same LSTM + Linear forward (same precision)."""
    if x.ndim == 2:
        x = x[:, None, :]
    w_ih_t, w_hh_t, b, w_fc_t, b_fc = params
    B, T, _ = x.shape
    H = w_hh_t.shape[0]
    h = jnp.zeros((B, H), jnp.float32)
    c = jnp.zeros((B, H), jnp.float32)
    for t in range(T):
        gates = (
            x[:, t, :] @ w_ih_t + b
            + jnp.dot(h.astype(w_hh_t.dtype), w_hh_t,
                      preferred_element_type=jnp.float32)
        )
        i = jax.nn.sigmoid(gates[:, 0 * H:1 * H])
        f = jax.nn.sigmoid(gates[:, 1 * H:2 * H])
        o = jax.nn.sigmoid(gates[:, 2 * H:3 * H])
        g = jnp.tanh(gates[:, 3 * H:4 * H])
        c = f * c + i * g
        h = o * jnp.tanh(c)
    return jnp.dot(h.astype(w_fc_t.dtype), w_fc_t,
                   preferred_element_type=jnp.float32) + b_fc


if __name__ == "__main__":
    # Small shapes consistent with the module: batch=2, seq=8, input=16,
    # hidden=32, classes=8.
    B, T, D_IN, HID, NCLS = 2, 8, 16, 32, 8

    key = jax.random.PRNGKey(0)
    k_x, k_p = jax.random.split(key)
    x = jax.random.normal(k_x, (B, T, D_IN), jnp.float32)
    params = init_params(k_p, D_IN, HID, NCLS)

    y = fetch_olivetti_faces_forward(x, params)
    y = jax.block_until_ready(y)

    y_ref = _reference_forward(x, params)
    assert y.shape == (B, NCLS)
    # bf16 recurrent weights -> allow a slightly looser tolerance than pure f32.
    assert jnp.allclose(y, y_ref, atol=1e-2, rtol=1e-2)

    print("KERNEL_OK")
</pallas_src>

<mosaic_0001>
module attributes {stable_mosaic.version = 11 : i64} {
  func.func @_lstm_fc_kernel(%arg0: memref<8x8x128xf32, #tpu.memory_space<vmem>>, %arg1: memref<32x128xbf16, #tpu.memory_space<vmem>>, %arg2: memref<32x8xbf16, #tpu.memory_space<vmem>>, %arg3: memref<1x8xf32, #tpu.memory_space<vmem>>, %arg4: memref<8x8xf32, #tpu.memory_space<vmem>>) attributes {dimension_semantics = [], scalar_prefetch = 0 : i64, scratch_operands = 0 : i64, tpu.core_type = #tpu.core_type<tc>} {
    %cst = arith.constant 0.000000e+00 : f32
    %0 = vector.broadcast %cst : f32 to vector<8x32xf32>
    %cst_0 = arith.constant 0.000000e+00 : f32
    %1 = vector.broadcast %cst_0 : f32 to vector<8x32xf32>
    %c0_i32 = arith.constant 0 : i32
    %2 = arith.index_cast %c0_i32 : i32 to index
    %c0 = arith.constant 0 : index
    %c0_1 = arith.constant 0 : index
    %3 = vector.load %arg0[%2, %c0, %c0_1] : memref<8x8x128xf32, #tpu.memory_space<vmem>>, vector<1x8x128xf32>
    %4 = vector.shape_cast %3 : vector<1x8x128xf32> to vector<8x128xf32>
    %5 = arith.truncf %0 : vector<8x32xf32> to vector<8x32xbf16>
    %c0_2 = arith.constant 0 : index
    %c0_3 = arith.constant 0 : index
    %6 = vector.load %arg1[%c0_2, %c0_3] : memref<32x128xbf16, #tpu.memory_space<vmem>>, vector<32x128xbf16>
    %cst_4 = arith.constant dense<0.000000e+00> : vector<8x128xf32>
    %7 = tpu.matmul %5, %6, %cst_4 {dimension_numbers = #tpu.dot_dimension_numbers<[1], [0], [0], [1], [0, 0, 1, 1], [], []>} : vector<8x32xbf16>, vector<32x128xbf16>, vector<8x128xf32> -> vector<8x128xf32>
    %8 = arith.addf %4, %7 : vector<8x128xf32>
    %9 = vector.extract_strided_slice %8 {offsets = [0, 0], sizes = [8, 96], strides = [1, 1]} : vector<8x128xf32> to vector<8x96xf32>
    %10 = arith.negf %9 : vector<8x96xf32>
    %11 = math.exp %10 : vector<8x96xf32>
    %cst_5 = arith.constant 1.000000e+00 : f32
    %12 = vector.broadcast %cst_5 : f32 to vector<8x96xf32>
    %13 = arith.addf %12, %11 : vector<8x96xf32>
    %14 = arith.divf %12, %13 : vector<8x96xf32>
    %15 = vector.extract_strided_slice %14 {offsets = [0, 0], sizes = [8, 32], strides = [1, 1]} : vector<8x96xf32> to vector<8x32xf32>
    %16 = vector.extract_strided_slice %14 {offsets = [0, 32], sizes = [8, 32], strides = [1, 1]} : vector<8x96xf32> to vector<8x32xf32>
    %17 = vector.extract_strided_slice %14 {offsets = [0, 64], sizes = [8, 32], strides = [1, 1]} : vector<8x96xf32> to vector<8x32xf32>
    %18 = vector.extract_strided_slice %8 {offsets = [0, 96], sizes = [8, 32], strides = [1, 1]} : vector<8x128xf32> to vector<8x32xf32>
    %19 = math.tanh %18 : vector<8x32xf32>
    %20 = arith.mulf %16, %1 : vector<8x32xf32>
    %21 = arith.mulf %15, %19 : vector<8x32xf32>
    %22 = arith.addf %20, %21 : vector<8x32xf32>
    %23 = math.tanh %22 : vector<8x32xf32>
    %24 = arith.mulf %17, %23 : vector<8x32xf32>
    %c1_i32 = arith.constant 1 : i32
    %25 = arith.index_cast %c1_i32 : i32 to index
    %c0_6 = arith.constant 0 : index
    %c0_7 = arith.constant 0 : index
    %26 = vector.load %arg0[%25, %c0_6, %c0_7] : memref<8x8x128xf32, #tpu.memory_space<vmem>>, vector<1x8x128xf32>
    %27 = vector.shape_cast %26 : vector<1x8x128xf32> to vector<8x128xf32>
    %28 = arith.truncf %24 : vector<8x32xf32> to vector<8x32xbf16>
    %c0_8 = arith.constant 0 : index
    %c0_9 = arith.constant 0 : index
    %29 = vector.load %arg1[%c0_8, %c0_9] : memref<32x128xbf16, #tpu.memory_space<vmem>>, vector<32x128xbf16>
    %cst_10 = arith.constant dense<0.000000e+00> : vector<8x128xf32>
    %30 = tpu.matmul %28, %29, %cst_10 {dimension_numbers = #tpu.dot_dimension_numbers<[1], [0], [0], [1], [0, 0, 1, 1], [], []>} : vector<8x32xbf16>, vector<32x128xbf16>, vector<8x128xf32> -> vector<8x128xf32>
    %31 = arith.addf %27, %30 : vector<8x128xf32>
    %32 = vector.extract_strided_slice %31 {offsets = [0, 0], sizes = [8, 96], strides = [1, 1]} : vector<8x128xf32> to vector<8x96xf32>
    %33 = arith.negf %32 : vector<8x96xf32>
    %34 = math.exp %33 : vector<8x96xf32>
    %cst_11 = arith.constant 1.000000e+00 : f32
    %35 = vector.broadcast %cst_11 : f32 to vector<8x96xf32>
    %36 = arith.addf %35, %34 : vector<8x96xf32>
    %37 = arith.divf %35, %36 : vector<8x96xf32>
    %38 = vector.extract_strided_slice %37 {offsets = [0, 0], sizes = [8, 32], strides = [1, 1]} : vector<8x96xf32> to vector<8x32xf32>
    %39 = vector.extract_strided_slice %37 {offsets = [0, 32], sizes = [8, 32], strides = [1, 1]} : vector<8x96xf32> to vector<8x32xf32>
    %40 = vector.extract_strided_slice %37 {offsets = [0, 64], sizes = [8, 32], strides = [1, 1]} : vector<8x96xf32> to vector<8x32xf32>
    %41 = vector.extract_strided_slice %31 {offsets = [0, 96], sizes = [8, 32], strides = [1, 1]} : vector<8x128xf32> to vector<8x32xf32>
    %42 = math.tanh %41 : vector<8x32xf32>
    %43 = arith.mulf %39, %22 : vector<8x32xf32>
    %44 = arith.mulf %38, %42 : vector<8x32xf32>
    %45 = arith.addf %43, %44 : vector<8x32xf32>
    %46 = math.tanh %45 : vector<8x32xf32>
    %47 = arith.mulf %40, %46 : vector<8x32xf32>
    %c2_i32 = arith.constant 2 : i32
    %48 = arith.index_cast %c2_i32 : i32 to index
    %c0_12 = arith.constant 0 : index
    %c0_13 = arith.constant 0 : index
    %49 = vector.load %arg0[%48, %c0_12, %c0_13] : memref<8x8x128xf32, #tpu.memory_space<vmem>>, vector<1x8x128xf32>
    %50 = vector.shape_cast %49 : vector<1x8x128xf32> to vector<8x128xf32>
    %51 = arith.truncf %47 : vector<8x32xf32> to vector<8x32xbf16>
    %c0_14 = arith.constant 0 : index
    %c0_15 = arith.constant 0 : index
    %52 = vector.load %arg1[%c0_14, %c0_15] : memref<32x128xbf16, #tpu.memory_space<vmem>>, vector<32x128xbf16>
    %cst_16 = arith.constant dense<0.000000e+00> : vector<8x128xf32>
    %53 = tpu.matmul %51, %52, %cst_16 {dimension_numbers = #tpu.dot_dimension_numbers<[1], [0], [0], [1], [0, 0, 1, 1], [], []>} : vector<8x32xbf16>, vector<32x128xbf16>, vector<8x128xf32> -> vector<8x128xf32>
    %54 = arith.addf %50, %53 : vector<8x128xf32>
    %55 = vector.extract_strided_slice %54 {offsets = [0, 0], sizes = [8, 96], strides = [1, 1]} : vector<8x128xf32> to vector<8x96xf32>
    %56 = arith.negf %55 : vector<8x96xf32>
    %57 = math.exp %56 : vector<8x96xf32>
    %cst_17 = arith.constant 1.000000e+00 : f32
    %58 = vector.broadcast %cst_17 : f32 to vector<8x96xf32>
    %59 = arith.addf %58, %57 : vector<8x96xf32>
    %60 = arith.divf %58, %59 : vector<8x96xf32>
    %61 = vector.extract_strided_slice %60 {offsets = [0, 0], sizes = [8, 32], strides = [1, 1]} : vector<8x96xf32> to vector<8x32xf32>
    %62 = vector.extract_strided_slice %60 {offsets = [0, 32], sizes = [8, 32], strides = [1, 1]} : vector<8x96xf32> to vector<8x32xf32>
    %63 = vector.extract_strided_slice %60 {offsets = [0, 64], sizes = [8, 32], strides = [1, 1]} : vector<8x96xf32> to vector<8x32xf32>
    %64 = vector.extract_strided_slice %54 {offsets = [0, 96], sizes = [8, 32], strides = [1, 1]} : vector<8x128xf32> to vector<8x32xf32>
    %65 = math.tanh %64 : vector<8x32xf32>
    %66 = arith.mulf %62, %45 : vector<8x32xf32>
    %67 = arith.mulf %61, %65 : vector<8x32xf32>
    %68 = arith.addf %66, %67 : vector<8x32xf32>
    %69 = math.tanh %68 : vector<8x32xf32>
    %70 = arith.mulf %63, %69 : vector<8x32xf32>
    %c3_i32 = arith.constant 3 : i32
    %71 = arith.index_cast %c3_i32 : i32 to index
    %c0_18 = arith.constant 0 : index
    %c0_19 = arith.constant 0 : index
    %72 = vector.load %arg0[%71, %c0_18, %c0_19] : memref<8x8x128xf32, #tpu.memory_space<vmem>>, vector<1x8x128xf32>
    %73 = vector.shape_cast %72 : vector<1x8x128xf32> to vector<8x128xf32>
    %74 = arith.truncf %70 : vector<8x32xf32> to vector<8x32xbf16>
    %c0_20 = arith.constant 0 : index
    %c0_21 = arith.constant 0 : index
    %75 = vector.load %arg1[%c0_20, %c0_21] : memref<32x128xbf16, #tpu.memory_space<vmem>>, vector<32x128xbf16>
    %cst_22 = arith.constant dense<0.000000e+00> : vector<8x128xf32>
    %76 = tpu.matmul %74, %75, %cst_22 {dimension_numbers = #tpu.dot_dimension_numbers<[1], [0], [0], [1], [0, 0, 1, 1], [], []>} : vector<8x32xbf16>, vector<32x128xbf16>, vector<8x128xf32> -> vector<8x128xf32>
    %77 = arith.addf %73, %76 : vector<8x128xf32>
    %78 = vector.extract_strided_slice %77 {offsets = [0, 0], sizes = [8, 96], strides = [1, 1]} : vector<8x128xf32> to vector<8x96xf32>
    %79 = arith.negf %78 : vector<8x96xf32>
    %80 = math.exp %79 : vector<8x96xf32>
    %cst_23 = arith.constant 1.000000e+00 : f32
    %81 = vector.broadcast %cst_23 : f32 to vector<8x96xf32>
    %82 = arith.addf %81, %80 : vector<8x96xf32>
    %83 = arith.divf %81, %82 : vector<8x96xf32>
    %84 = vector.extract_strided_slice %83 {offsets = [0, 0], sizes = [8, 32], strides = [1, 1]} : vector<8x96xf32> to vector<8x32xf32>
    %85 = vector.extract_strided_slice %83 {offsets = [0, 32], sizes = [8, 32], strides = [1, 1]} : vector<8x96xf32> to vector<8x32xf32>
    %86 = vector.extract_strided_slice %83 {offsets = [0, 64], sizes = [8, 32], strides = [1, 1]} : vector<8x96xf32> to vector<8x32xf32>
    %87 = vector.extract_strided_slice %77 {offsets = [0, 96], sizes = [8, 32], strides = [1, 1]} : vector<8x128xf32> to vector<8x32xf32>
    %88 = math.tanh %87 : vector<8x32xf32>
    %89 = arith.mulf %85, %68 : vector<8x32xf32>
    %90 = arith.mulf %84, %88 : vector<8x32xf32>
    %91 = arith.addf %89, %90 : vector<8x32xf32>
    %92 = math.tanh %91 : vector<8x32xf32>
    %93 = arith.mulf %86, %92 : vector<8x32xf32>
    %c4_i32 = arith.constant 4 : i32
    %94 = arith.index_cast %c4_i32 : i32 to index
    %c0_24 = arith.constant 0 : index
    %c0_25 = arith.constant 0 : index
    %95 = vector.load %arg0[%94, %c0_24, %c0_25] : memref<8x8x128xf32, #tpu.memory_space<vmem>>, vector<1x8x128xf32>
    %96 = vector.shape_cast %95 : vector<1x8x128xf32> to vector<8x128xf32>
    %97 = arith.truncf %93 : vector<8x32xf32> to vector<8x32xbf16>
    %c0_26 = arith.constant 0 : index
    %c0_27 = arith.constant 0 : index
    %98 = vector.load %arg1[%c0_26, %c0_27] : memref<32x128xbf16, #tpu.memory_space<vmem>>, vector<32x128xbf16>
    %cst_28 = arith.constant dense<0.000000e+00> : vector<8x128xf32>
    %99 = tpu.matmul %97, %98, %cst_28 {dimension_numbers = #tpu.dot_dimension_numbers<[1], [0], [0], [1], [0, 0, 1, 1], [], []>} : vector<8x32xbf16>, vector<32x128xbf16>, vector<8x128xf32> -> vector<8x128xf32>
    %100 = arith.addf %96, %99 : vector<8x128xf32>
    %101 = vector.extract_strided_slice %100 {offsets = [0, 0], sizes = [8, 96], strides = [1, 1]} : vector<8x128xf32> to vector<8x96xf32>
    %102 = arith.negf %101 : vector<8x96xf32>
    %103 = math.exp %102 : vector<8x96xf32>
    %cst_29 = arith.constant 1.000000e+00 : f32
    %104 = vector.broadcast %cst_29 : f32 to vector<8x96xf32>
    %105 = arith.addf %104, %103 : vector<8x96xf32>
    %106 = arith.divf %104, %105 : vector<8x96xf32>
    %107 = vector.extract_strided_slice %106 {offsets = [0, 0], sizes = [8, 32], strides = [1, 1]} : vector<8x96xf32> to vector<8x32xf32>
    %108 = vector.extract_strided_slice %106 {offsets = [0, 32], sizes = [8, 32], strides = [1, 1]} : vector<8x96xf32> to vector<8x32xf32>
    %109 = vector.extract_strided_slice %106 {offsets = [0, 64], sizes = [8, 32], strides = [1, 1]} : vector<8x96xf32> to vector<8x32xf32>
    %110 = vector.extract_strided_slice %100 {offsets = [0, 96], sizes = [8, 32], strides = [1, 1]} : vector<8x128xf32> to vector<8x32xf32>
    %111 = math.tanh %110 : vector<8x32xf32>
    %112 = arith.mulf %108, %91 : vector<8x32xf32>
    %113 = arith.mulf %107, %111 : vector<8x32xf32>
    %114 = arith.addf %112, %113 : vector<8x32xf32>
    %115 = math.tanh %114 : vector<8x32xf32>
    %116 = arith.mulf %109, %115 : vector<8x32xf32>
    %c5_i32 = arith.constant 5 : i32
    %117 = arith.index_cast %c5_i32 : i32 to index
    %c0_30 = arith.constant 0 : index
    %c0_31 = arith.constant 0 : index
    %118 = vector.load %arg0[%117, %c0_30, %c0_31] : memref<8x8x128xf32, #tpu.memory_space<vmem>>, vector<1x8x128xf32>
    %119 = vector.shape_cast %118 : vector<1x8x128xf32> to vector<8x128xf32>
    %120 = arith.truncf %116 : vector<8x32xf32> to vector<8x32xbf16>
    %c0_32 = arith.constant 0 : index
    %c0_33 = arith.constant 0 : index
    %121 = vector.load %arg1[%c0_32, %c0_33] : memref<32x128xbf16, #tpu.memory_space<vmem>>, vector<32x128xbf16>
    %cst_34 = arith.constant dense<0.000000e+00> : vector<8x128xf32>
    %122 = tpu.matmul %120, %121, %cst_34 {dimension_numbers = #tpu.dot_dimension_numbers<[1], [0], [0], [1], [0, 0, 1, 1], [], []>} : vector<8x32xbf16>, vector<32x128xbf16>, vector<8x128xf32> -> vector<8x128xf32>
    %123 = arith.addf %119, %122 : vector<8x128xf32>
    %124 = vector.extract_strided_slice %123 {offsets = [0, 0], sizes = [8, 96], strides = [1, 1]} : vector<8x128xf32> to vector<8x96xf32>
    %125 = arith.negf %124 : vector<8x96xf32>
    %126 = math.exp %125 : vector<8x96xf32>
    %cst_35 = arith.constant 1.000000e+00 : f32
    %127 = vector.broadcast %cst_35 : f32 to vector<8x96xf32>
    %128 = arith.addf %127, %126 : vector<8x96xf32>
    %129 = arith.divf %127, %128 : vector<8x96xf32>
    %130 = vector.extract_strided_slice %129 {offsets = [0, 0], sizes = [8, 32], strides = [1, 1]} : vector<8x96xf32> to vector<8x32xf32>
    %131 = vector.extract_strided_slice %129 {offsets = [0, 32], sizes = [8, 32], strides = [1, 1]} : vector<8x96xf32> to vector<8x32xf32>
    %132 = vector.extract_strided_slice %129 {offsets = [0, 64], sizes = [8, 32], strides = [1, 1]} : vector<8x96xf32> to vector<8x32xf32>
    %133 = vector.extract_strided_slice %123 {offsets = [0, 96], sizes = [8, 32], strides = [1, 1]} : vector<8x128xf32> to vector<8x32xf32>
    %134 = math.tanh %133 : vector<8x32xf32>
    %135 = arith.mulf %131, %114 : vector<8x32xf32>
    %136 = arith.mulf %130, %134 : vector<8x32xf32>
    %137 = arith.addf %135, %136 : vector<8x32xf32>
    %138 = math.tanh %137 : vector<8x32xf32>
    %139 = arith.mulf %132, %138 : vector<8x32xf32>
    %c6_i32 = arith.constant 6 : i32
    %140 = arith.index_cast %c6_i32 : i32 to index
    %c0_36 = arith.constant 0 : index
    %c0_37 = arith.constant 0 : index
    %141 = vector.load %arg0[%140, %c0_36, %c0_37] : memref<8x8x128xf32, #tpu.memory_space<vmem>>, vector<1x8x128xf32>
    %142 = vector.shape_cast %141 : vector<1x8x128xf32> to vector<8x128xf32>
    %143 = arith.truncf %139 : vector<8x32xf32> to vector<8x32xbf16>
    %c0_38 = arith.constant 0 : index
    %c0_39 = arith.constant 0 : index
    %144 = vector.load %arg1[%c0_38, %c0_39] : memref<32x128xbf16, #tpu.memory_space<vmem>>, vector<32x128xbf16>
    %cst_40 = arith.constant dense<0.000000e+00> : vector<8x128xf32>
    %145 = tpu.matmul %143, %144, %cst_40 {dimension_numbers = #tpu.dot_dimension_numbers<[1], [0], [0], [1], [0, 0, 1, 1], [], []>} : vector<8x32xbf16>, vector<32x128xbf16>, vector<8x128xf32> -> vector<8x128xf32>
    %146 = arith.addf %142, %145 : vector<8x128xf32>
    %147 = vector.extract_strided_slice %146 {offsets = [0, 0], sizes = [8, 96], strides = [1, 1]} : vector<8x128xf32> to vector<8x96xf32>
    %148 = arith.negf %147 : vector<8x96xf32>
    %149 = math.exp %148 : vector<8x96xf32>
    %cst_41 = arith.constant 1.000000e+00 : f32
    %150 = vector.broadcast %cst_41 : f32 to vector<8x96xf32>
    %151 = arith.addf %150, %149 : vector<8x96xf32>
    %152 = arith.divf %150, %151 : vector<8x96xf32>
    %153 = vector.extract_strided_slice %152 {offsets = [0, 0], sizes = [8, 32], strides = [1, 1]} : vector<8x96xf32> to vector<8x32xf32>
    %154 = vector.extract_strided_slice %152 {offsets = [0, 32], sizes = [8, 32], strides = [1, 1]} : vector<8x96xf32> to vector<8x32xf32>
    %155 = vector.extract_strided_slice %152 {offsets = [0, 64], sizes = [8, 32], strides = [1, 1]} : vector<8x96xf32> to vector<8x32xf32>
    %156 = vector.extract_strided_slice %146 {offsets = [0, 96], sizes = [8, 32], strides = [1, 1]} : vector<8x128xf32> to vector<8x32xf32>
    %157 = math.tanh %156 : vector<8x32xf32>
    %158 = arith.mulf %154, %137 : vector<8x32xf32>
    %159 = arith.mulf %153, %157 : vector<8x32xf32>
    %160 = arith.addf %158, %159 : vector<8x32xf32>
    %161 = math.tanh %160 : vector<8x32xf32>
    %162 = arith.mulf %155, %161 : vector<8x32xf32>
    %c7_i32 = arith.constant 7 : i32
    %163 = arith.index_cast %c7_i32 : i32 to index
    %c0_42 = arith.constant 0 : index
    %c0_43 = arith.constant 0 : index
    %164 = vector.load %arg0[%163, %c0_42, %c0_43] : memref<8x8x128xf32, #tpu.memory_space<vmem>>, vector<1x8x128xf32>
    %165 = vector.shape_cast %164 : vector<1x8x128xf32> to vector<8x128xf32>
    %166 = arith.truncf %162 : vector<8x32xf32> to vector<8x32xbf16>
    %c0_44 = arith.constant 0 : index
    %c0_45 = arith.constant 0 : index
    %167 = vector.load %arg1[%c0_44, %c0_45] : memref<32x128xbf16, #tpu.memory_space<vmem>>, vector<32x128xbf16>
    %cst_46 = arith.constant dense<0.000000e+00> : vector<8x128xf32>
    %168 = tpu.matmul %166, %167, %cst_46 {dimension_numbers = #tpu.dot_dimension_numbers<[1], [0], [0], [1], [0, 0, 1, 1], [], []>} : vector<8x32xbf16>, vector<32x128xbf16>, vector<8x128xf32> -> vector<8x128xf32>
    %169 = arith.addf %165, %168 : vector<8x128xf32>
    %170 = vector.extract_strided_slice %169 {offsets = [0, 0], sizes = [8, 96], strides = [1, 1]} : vector<8x128xf32> to vector<8x96xf32>
    %171 = arith.negf %170 : vector<8x96xf32>
    %172 = math.exp %171 : vector<8x96xf32>
    %cst_47 = arith.constant 1.000000e+00 : f32
    %173 = vector.broadcast %cst_47 : f32 to vector<8x96xf32>
    %174 = arith.addf %173, %172 : vector<8x96xf32>
    %175 = arith.divf %173, %174 : vector<8x96xf32>
    %176 = vector.extract_strided_slice %175 {offsets = [0, 0], sizes = [8, 32], strides = [1, 1]} : vector<8x96xf32> to vector<8x32xf32>
    %177 = vector.extract_strided_slice %175 {offsets = [0, 32], sizes = [8, 32], strides = [1, 1]} : vector<8x96xf32> to vector<8x32xf32>
    %178 = vector.extract_strided_slice %175 {offsets = [0, 64], sizes = [8, 32], strides = [1, 1]} : vector<8x96xf32> to vector<8x32xf32>
    %179 = vector.extract_strided_slice %169 {offsets = [0, 96], sizes = [8, 32], strides = [1, 1]} : vector<8x128xf32> to vector<8x32xf32>
    %180 = math.tanh %179 : vector<8x32xf32>
    %181 = arith.mulf %177, %160 : vector<8x32xf32>
    %182 = arith.mulf %176, %180 : vector<8x32xf32>
    %183 = arith.addf %181, %182 : vector<8x32xf32>
    %184 = math.tanh %183 : vector<8x32xf32>
    %185 = arith.mulf %178, %184 : vector<8x32xf32>
    %c8_i32 = arith.constant 8 : i32
    %186 = arith.truncf %185 : vector<8x32xf32> to vector<8x32xbf16>
    %c0_48 = arith.constant 0 : index
    %c0_49 = arith.constant 0 : index
    %187 = vector.load %arg2[%c0_48, %c0_49] : memref<32x8xbf16, #tpu.memory_space<vmem>>, vector<32x8xbf16>
    %cst_50 = arith.constant dense<0.000000e+00> : vector<8x8xf32>
    %188 = tpu.matmul %186, %187, %cst_50 {dimension_numbers = #tpu.dot_dimension_numbers<[1], [0], [0], [1], [0, 0, 1, 1], [], []>} : vector<8x32xbf16>, vector<32x8xbf16>, vector<8x8xf32> -> vector<8x8xf32>
    %c0_51 = arith.constant 0 : index
    %c0_52 = arith.constant 0 : index
    %189 = vector.load %arg3[%c0_51, %c0_52] : memref<1x8xf32, #tpu.memory_space<vmem>>, vector<1x8xf32>
    %190 = vector.broadcast %189 : vector<1x8xf32> to vector<8x8xf32>
    %191 = arith.addf %188, %190 : vector<8x8xf32>
    %c0_53 = arith.constant 0 : index
    %c0_54 = arith.constant 0 : index
    %192 = vector.load %arg4[%c0_53, %c0_54] : memref<8x8xf32, #tpu.memory_space<vmem>>, vector<8x8xf32>
    tpu.vector_store %arg4[%c0_53, %c0_54], %191 {strides = array<i32>} : memref<8x8xf32, #tpu.memory_space<vmem>>, vector<8x8xf32>,
    return
  }
}

</mosaic_0001>

<llo_original>
// kernel: tpu_custom_call.1
$region0: #{tpu_custom_call.1}
  #allocation0 [shape = 'u32[]', space=smem, size = 0x4, offset = 0x4, fixed_abs, tag = 'smem constant byte address 0x4 - core index']
  #allocation1 [shape = 'u32[72,128]{1,0:T(1,128)}', space=vmem, size = 0x9000, scoped, tag = 'internal scratch']
  %s0 = inlined_call_operand.hbm [shape: f32[8,8,128], index: 0, kind: input, shape index: {}]
  %s1 = inlined_call_operand.vmem [shape: bf16[32,128], index: 1, kind: input, shape index: {}]
  %s2 = inlined_call_operand.vmem [shape: bf16[32,8], index: 2, kind: input, shape index: {}]
  %s3 = inlined_call_operand.vmem [shape: f32[1,8], index: 3, kind: input, shape index: {}]
  %s4 = inlined_call_operand.hbm [shape: f32[8,8], index: 4, kind: output, shape index: {}]
  %s5 = sld [smem:[#allocation0]]
  $region30: #{tpu_custom_call.1} parent=0
    _
  %s7 = ssub.s32 1, %s5
  %s8 = scalar_select 0, %s7, %s5
  $region1: #{tpu_custom_call.1} parent=0
    #allocation2 [shape = 'u8[32768]{0}', space=vmem, size = 0x8000, scoped, tag = 'input window, operand 0, single buffered']
    #allocation3 [shape = 's32[1]{0}', space=sflag, size = 0x4, scoped, tag = 'scoped memory for tpu_custom_call.1']
    #allocation4 [shape = 's32[1]{0}', space=sflag, size = 0x4, scoped, tag = 'scoped memory for tpu_custom_call.1']
    #allocation5 [shape = 'u8[4096]{0}', space=vmem, size = 0x1000, scoped, tag = 'output window, operand 0, single buffered']
    %9 = vsyncpa [#allocation3], 0
    %10 = vsyncpa [#allocation4], 0
    // Predicated region
    $region2: #{tpu_custom_call.1} parent=1 // pred_check
      _
    $region3: #{tpu_custom_call.1} parent=1 // pred_check_branch
      %12 = sbr.rel (0) target = $region5
    $region4: #{tpu_custom_call.1} parent=1 // pred_region
      %14 = vsyncadd [#allocation3], 0
      %s15 = sshll.u32 %s0, 4
      %s16 = int_to_ptr.hbm [resolvable:$true] %s15
      %s17 = sshll.u32 [#allocation2], 4
      %s18 = int_to_ptr.vmem [resolvable:$true] %s17
      %23 = dma.hbm_to_vmem [thread:$0]  %s16, 1024, %s18, [#allocation3], 128, 128, 8
    $region5: #{tpu_custom_call.1} parent=1 // pred_fallthru
      _
    // Predicated region
    $region6: #{tpu_custom_call.1} parent=1 // pred_check
      _
    $region7: #{tpu_custom_call.1} parent=1 // pred_check_branch
      %25 = sbr.rel (0) target = $region9
    $region8: #{tpu_custom_call.1} parent=1 // pred_region
      _
    $region9: #{tpu_custom_call.1} parent=1 // pred_fallthru
      _
    // Predicated region
    $region10: #{tpu_custom_call.1} parent=1 // pred_check
      _
    $region11: #{tpu_custom_call.1} parent=1 // pred_check_branch
      %27 = sbr.rel (0) target = $region13
    $region12: #{tpu_custom_call.1} parent=1 // pred_region
      _
    $region13: #{tpu_custom_call.1} parent=1 // pred_fallthru
      _
    // Predicated region
    $region14: #{tpu_custom_call.1} parent=1 // pred_check
      _
    $region15: #{tpu_custom_call.1} parent=1 // pred_check_branch
      %29 = sbr.rel (0) target = $region17
    $region16: #{tpu_custom_call.1} parent=1 // pred_region
      _
    $region17: #{tpu_custom_call.1} parent=1 // pred_fallthru
      _
    // Predicated region
    $region18: #{tpu_custom_call.1} parent=1 // pred_check
      _
    $region19: #{tpu_custom_call.1} parent=1 // pred_check_branch
      %31 = sbr.rel (0) target = $region21
    $region20: #{tpu_custom_call.1} parent=1 // pred_region
      %33 = dma.done [#allocation3], 1024
    $region21: #{tpu_custom_call.1} parent=1 // pred_fallthru
      _
    %v35 = vld [vmem:[#allocation2] sm:$0xff]
    %v36 = vld [vmem:[%s1] sm:$0xf]
    %v37 = vld [vmem:[%s1 + $0x4] sm:$0xf]
    %v38 = vld [vmem:[%s1 + $0x8] sm:$0xf]
    %v39 = vld [vmem:[%s1 + $0xc] sm:$0xf]
    %v44 = vunpack.c.l.b16 %v36
    %v45 = vunpack.c.l.b16 %v37
    %v46 = vunpack.c.l.b16 %v38
    %v47 = vunpack.c.l.b16 %v39
    %v48 = vpack.c.b16 %v45, %v44
    %v49 = vpack.c.b16 %v47, %v46
    %vm52 = vcmask 261120
    %v54 = vsel %vm52, 0, 0
    %56 = vmatpush.bf16.msra.mxu0 0
    %57 = vmatpush.bf16.msra.mxu0 0
    %58 = vmatpush.bf16.msra.mxu0 0
    %59 = vmatpush.bf16.msra.mxu0 0
    %60 = vmatpush.bf16.msra.mxu0 0
    %61 = vmatpush.bf16.msra.mxu0 0
    %62 = vmatpush.bf16.msra.mxu0 %v49
    %63 = vmatpush.bf16.msra.mxu0 %v48
    %64 = vmatmul.bf16.gmra.mxu0 %v54
    %v65 = vpop.f32.mrf.mxu0
    %v66 = vadd.f32 0.0, %v65
    %v67 = vpop.f32.mrf.mxu0
    %68 = vdwg.mxu0
    %v69 = vadd.f32 %v35, %v66
    %v70 = vxor.u32 %v69, 2147483648
    %v71 = vmul.f32 %v70, 1.442695
    %v72 = vpow.pop %v71
    %v73 = vadd.f32 %v72, 1.0
    %v74 = vrcp.pop %v73
    %v75 = vmul.f32 %v73, %v74
    %v76 = vsub.f32 1.0, %v75
    %v77 = vmul.f32 %v74, %v76
    %v78 = vadd.f32 %v74, %v77
    %vm79 = vweird.f32 %v73
    %vm80 = vweird.f32 %v74
    %vm81 = vmor %vm79, %vm80
    %v82 = vsel %vm81, %v74, %v78
    %v83 = vand.u32 2147483647, %v73
    %vm84 = vcmp.eq.f32.partialorder %v83, 8.507059e+37
    %v85 = vand.u32 %v73, 2147483648
    %v86 = vor.u32 1.1754944e-38, %v85
    %v87 = vsel %vm84, %v86, %v82
    %v88 = vmul.f32 1.0, %v87
    %v89 = vtanh.pop %v69
    %v90 = vmul.f32 %v88, 0.0
    %92 = vrot.lane.b32.xlu0 %v89, 32
    %v93 = vpop.permute.xlu0 %92
    %v95 = vmul.f32 %v88, %v93
    %97 = vrot.lane.b32.xlu0 %v95, 32
    %v98 = vpop.permute.xlu0 %97
    %v100 = vadd.f32 %v90, %v98
    %v101 = vtanh.pop %v100
    %103 = vrot.lane.b32.xlu0 %v101, 32
    %v104 = vpop.permute.xlu0 %103
    %v106 = vmul.f32 %v88, %v104
    %s107 = scalar_lea.vmem [#allocation2], 8
    %v108 = vld [vmem:[%s107] sm:$0xff]
    %v109 = vpack.c.bf16 %v106, %v106
    %111 = vrot.lane.b32.xlu0 %v109, 64
    %v112 = vpop.permute.xlu0 %111
    %v114 = vsel %vm52, %v112, 0
    %116 = vmatpush.bf16.msra.mxu0 0
    %117 = vmatpush.bf16.msra.mxu0 0
    %118 = vmatpush.bf16.msra.mxu0 0
    %119 = vmatpush.bf16.msra.mxu0 0
    %120 = vmatpush.bf16.msra.mxu0 0
    %121 = vmatpush.bf16.msra.mxu0 0
    %122 = vmatpush.bf16.msra.mxu0 %v49
    %123 = vmatpush.bf16.msra.mxu0 %v48
    %124 = vmatmul.bf16.gmra.mxu0 %v114
    %v125 = vpop.f32.mrf.mxu0
    %v126 = vadd.f32 0.0, %v125
    %v127 = vpop.f32.mrf.mxu0
    %128 = vdwg.mxu0
    %v129 = vadd.f32 %v108, %v126
    %v130 = vxor.u32 %v129, 2147483648
    %v131 = vmul.f32 %v130, 1.442695
    %v132 = vpow.pop %v131
    %v133 = vadd.f32 %v132, 1.0
    %v134 = vrcp.pop %v133
    %v135 = vmul.f32 %v133, %v134
    %v136 = vsub.f32 1.0, %v135
    %v137 = vmul.f32 %v134, %v136
    %v138 = vadd.f32 %v134, %v137
    %vm139 = vweird.f32 %v133
    %vm140 = vweird.f32 %v134
    %vm141 = vmor %vm139, %vm140
    %v142 = vsel %vm141, %v134, %v138
    %v143 = vand.u32 2147483647, %v133
    %vm144 = vcmp.eq.f32.partialorder %v143, 8.507059e+37
    %v145 = vand.u32 %v133, 2147483648
    %v146 = vor.u32 1.1754944e-38, %v145
    %v147 = vsel %vm144, %v146, %v142
    %v148 = vmul.f32 1.0, %v147
    %v149 = vtanh.pop %v129
    %v150 = vmul.f32 %v148, %v100
    %152 = vrot.lane.b32.xlu0 %v149, 32
    %v153 = vpop.permute.xlu0 %152
    %v155 = vmul.f32 %v148, %v153
    %157 = vrot.lane.b32.xlu0 %v155, 32
    %v158 = vpop.permute.xlu0 %157
    %v160 = vadd.f32 %v150, %v158
    %v161 = vtanh.pop %v160
    %163 = vrot.lane.b32.xlu0 %v161, 32
    %v164 = vpop.permute.xlu0 %163
    %v166 = vmul.f32 %v148, %v164
    %s167 = scalar_lea.vmem [#allocation2], 16
    %v168 = vld [vmem:[%s167] sm:$0xff]
    %v169 = vpack.c.bf16 %v166, %v166
    %171 = vrot.lane.b32.xlu0 %v169, 64
    %v172 = vpop.permute.xlu0 %171
    %v174 = vsel %vm52, %v172, 0
    %176 = vmatpush.bf16.msra.mxu0 0
    %177 = vmatpush.bf16.msra.mxu0 0
    %178 = vmatpush.bf16.msra.mxu0 0
    %179 = vmatpush.bf16.msra.mxu0 0
    %180 = vmatpush.bf16.msra.mxu0 0
    %181 = vmatpush.bf16.msra.mxu0 0
    %182 = vmatpush.bf16.msra.mxu0 %v49
    %183 = vmatpush.bf16.msra.mxu0 %v48
    %184 = vmatmul.bf16.gmra.mxu0 %v174
    %v185 = vpop.f32.mrf.mxu0
    %v186 = vadd.f32 0.0, %v185
    %v187 = vpop.f32.mrf.mxu0
    %188 = vdwg.mxu0
    %v189 = vadd.f32 %v168, %v186
    %v190 = vxor.u32 %v189, 2147483648
    %v191 = vmul.f32 %v190, 1.442695
    %v192 = vpow.pop %v191
    %v193 = vadd.f32 %v192, 1.0
    %v194 = vrcp.pop %v193
    %v195 = vmul.f32 %v193, %v194
    %v196 = vsub.f32 1.0, %v195
    %v197 = vmul.f32 %v194, %v196
    %v198 = vadd.f32 %v194, %v197
    %vm199 = vweird.f32 %v193
    %vm200 = vweird.f32 %v194
    %vm201 = vmor %vm199, %vm200
    %v202 = vsel %vm201, %v194, %v198
    %v203 = vand.u32 2147483647, %v193
    %vm204 = vcmp.eq.f32.partialorder %v203, 8.507059e+37
    %v205 = vand.u32 %v193, 2147483648
    %v206 = vor.u32 1.1754944e-38, %v205
    %v207 = vsel %vm204, %v206, %v202
    %v208 = vmul.f32 1.0, %v207
    %v209 = vtanh.pop %v189
    %v210 = vmul.f32 %v208, %v160
    %212 = vrot.lane.b32.xlu0 %v209, 32
    %v213 = vpop.permute.xlu0 %212
    %v215 = vmul.f32 %v208, %v213
    %217 = vrot.lane.b32.xlu0 %v215, 32
    %v218 = vpop.permute.xlu0 %217
    %v220 = vadd.f32 %v210, %v218
    %v221 = vtanh.pop %v220
    %223 = vrot.lane.b32.xlu0 %v221, 32
    %v224 = vpop.permute.xlu0 %223
    %v226 = vmul.f32 %v208, %v224
    %s227 = scalar_lea.vmem [#allocation2], 24
    %v228 = vld [vmem:[%s227] sm:$0xff]
    %v229 = vpack.c.bf16 %v226, %v226
    %231 = vrot.lane.b32.xlu0 %v229, 64
    %v232 = vpop.permute.xlu0 %231
    %v234 = vsel %vm52, %v232, 0
    %236 = vmatpush.bf16.msra.mxu0 0
    %237 = vmatpush.bf16.msra.mxu0 0
    %238 = vmatpush.bf16.msra.mxu0 0
    %239 = vmatpush.bf16.msra.mxu0 0
    %240 = vmatpush.bf16.msra.mxu0 0
    %241 = vmatpush.bf16.msra.mxu0 0
    %242 = vmatpush.bf16.msra.mxu0 %v49
    %243 = vmatpush.bf16.msra.mxu0 %v48
    %244 = vmatmul.bf16.gmra.mxu0 %v234
    %v245 = vpop.f32.mrf.mxu0
    %v246 = vadd.f32 0.0, %v245
    %v247 = vpop.f32.mrf.mxu0
    %248 = vdwg.mxu0
    %v249 = vadd.f32 %v228, %v246
    %v250 = vxor.u32 %v249, 2147483648
    %v251 = vmul.f32 %v250, 1.442695
    %v252 = vpow.pop %v251
    %v253 = vadd.f32 %v252, 1.0
    %v254 = vrcp.pop %v253
    %v255 = vmul.f32 %v253, %v254
    %v256 = vsub.f32 1.0, %v255
    %v257 = vmul.f32 %v254, %v256
    %v258 = vadd.f32 %v254, %v257
    %vm259 = vweird.f32 %v253
    %vm260 = vweird.f32 %v254
    %vm261 = vmor %vm259, %vm260
    %v262 = vsel %vm261, %v254, %v258
    %v263 = vand.u32 2147483647, %v253
    %vm264 = vcmp.eq.f32.partialorder %v263, 8.507059e+37
    %v265 = vand.u32 %v253, 2147483648
    %v266 = vor.u32 1.1754944e-38, %v265
    %v267 = vsel %vm264, %v266, %v262
    %v268 = vmul.f32 1.0, %v267
    %v269 = vtanh.pop %v249
    %v270 = vmul.f32 %v268, %v220
    %272 = vrot.lane.b32.xlu0 %v269, 32
    %v273 = vpop.permute.xlu0 %272
    %v275 = vmul.f32 %v268, %v273
    %277 = vrot.lane.b32.xlu0 %v275, 32
    %v278 = vpop.permute.xlu0 %277
    %v280 = vadd.f32 %v270, %v278
    %v281 = vtanh.pop %v280
    %283 = vrot.lane.b32.xlu0 %v281, 32
    %v284 = vpop.permute.xlu0 %283
    %v286 = vmul.f32 %v268, %v284
    %s287 = scalar_lea.vmem [#allocation2], 32
    %v288 = vld [vmem:[%s287] sm:$0xff]
    %v289 = vpack.c.bf16 %v286, %v286
    %291 = vrot.lane.b32.xlu0 %v289, 64
    %v292 = vpop.permute.xlu0 %291
    %v294 = vsel %vm52, %v292, 0
    %296 = vmatpush.bf16.msra.mxu0 0
    %297 = vmatpush.bf16.msra.mxu0 0
    %298 = vmatpush.bf16.msra.mxu0 0
    %299 = vmatpush.bf16.msra.mxu0 0
    %300 = vmatpush.bf16.msra.mxu0 0
    %301 = vmatpush.bf16.msra.mxu0 0
    %302 = vmatpush.bf16.msra.mxu0 %v49
    %303 = vmatpush.bf16.msra.mxu0 %v48
    %304 = vmatmul.bf16.gmra.mxu0 %v294
    %v305 = vpop.f32.mrf.mxu0
    %v306 = vadd.f32 0.0, %v305
    %v307 = vpop.f32.mrf.mxu0
    %308 = vdwg.mxu0
    %v309 = vadd.f32 %v288, %v306
    %v310 = vxor.u32 %v309, 2147483648
    %v311 = vmul.f32 %v310, 1.442695
    %v312 = vpow.pop %v311
    %v313 = vadd.f32 %v312, 1.0
    %v314 = vrcp.pop %v313
    %v315 = vmul.f32 %v313, %v314
    %v316 = vsub.f32 1.0, %v315
    %v317 = vmul.f32 %v314, %v316
    %v318 = vadd.f32 %v314, %v317
    %vm319 = vweird.f32 %v313
    %vm320 = vweird.f32 %v314
    %vm321 = vmor %vm319, %vm320
    %v322 = vsel %vm321, %v314, %v318
    %v323 = vand.u32 2147483647, %v313
    %vm324 = vcmp.eq.f32.partialorder %v323, 8.507059e+37
    %v325 = vand.u32 %v313, 2147483648
    %v326 = vor.u32 1.1754944e-38, %v325
    %v327 = vsel %vm324, %v326, %v322
    %v328 = vmul.f32 1.0, %v327
    %v329 = vtanh.pop %v309
    %v330 = vmul.f32 %v328, %v280
    %332 = vrot.lane.b32.xlu0 %v329, 32
    %v333 = vpop.permute.xlu0 %332
    %v335 = vmul.f32 %v328, %v333
    %337 = vrot.lane.b32.xlu0 %v335, 32
    %v338 = vpop.permute.xlu0 %337
    %v340 = vadd.f32 %v330, %v338
    %v341 = vtanh.pop %v340
    %343 = vrot.lane.b32.xlu0 %v341, 32
    %v344 = vpop.permute.xlu0 %343
    %v346 = vmul.f32 %v328, %v344
    %s347 = scalar_lea.vmem [#allocation2], 40
    %v348 = vld [vmem:[%s347] sm:$0xff]
    %v349 = vpack.c.bf16 %v346, %v346
    %351 = vrot.lane.b32.xlu0 %v349, 64
    %v352 = vpop.permute.xlu0 %351
    %v354 = vsel %vm52, %v352, 0
    %356 = vmatpush.bf16.msra.mxu0 0
    %357 = vmatpush.bf16.msra.mxu0 0
    %358 = vmatpush.bf16.msra.mxu0 0
    %359 = vmatpush.bf16.msra.mxu0 0
    %360 = vmatpush.bf16.msra.mxu0 0
    %361 = vmatpush.bf16.msra.mxu0 0
    %362 = vmatpush.bf16.msra.mxu0 %v49
    %363 = vmatpush.bf16.msra.mxu0 %v48
    %364 = vmatmul.bf16.gmra.mxu0 %v354
    %v365 = vpop.f32.mrf.mxu0
    %v366 = vadd.f32 0.0, %v365
    %v367 = vpop.f32.mrf.mxu0
    %368 = vdwg.mxu0
    %v369 = vadd.f32 %v348, %v366
    %v370 = vxor.u32 %v369, 2147483648
    %v371 = vmul.f32 %v370, 1.442695
    %v372 = vpow.pop %v371
    %v373 = vadd.f32 %v372, 1.0
    %v374 = vrcp.pop %v373
    %v375 = vmul.f32 %v373, %v374
    %v376 = vsub.f32 1.0, %v375
    %v377 = vmul.f32 %v374, %v376
    %v378 = vadd.f32 %v374, %v377
    %vm379 = vweird.f32 %v373
    %vm380 = vweird.f32 %v374
    %vm381 = vmor %vm379, %vm380
    %v382 = vsel %vm381, %v374, %v378
    %v383 = vand.u32 2147483647, %v373
    %vm384 = vcmp.eq.f32.partialorder %v383, 8.507059e+37
    %v385 = vand.u32 %v373, 2147483648
    %v386 = vor.u32 1.1754944e-38, %v385
    %v387 = vsel %vm384, %v386, %v382
    %v388 = vmul.f32 1.0, %v387
    %v389 = vtanh.pop %v369
    %v390 = vmul.f32 %v388, %v340
    %392 = vrot.lane.b32.xlu0 %v389, 32
    %v393 = vpop.permute.xlu0 %392
    %v395 = vmul.f32 %v388, %v393
    %397 = vrot.lane.b32.xlu0 %v395, 32
    %v398 = vpop.permute.xlu0 %397
    %v400 = vadd.f32 %v390, %v398
    %v401 = vtanh.pop %v400
    %403 = vrot.lane.b32.xlu0 %v401, 32
    %v404 = vpop.permute.xlu0 %403
    %v406 = vmul.f32 %v388, %v404
    %s407 = scalar_lea.vmem [#allocation2], 48
    %v408 = vld [vmem:[%s407] sm:$0xff]
    %v409 = vpack.c.bf16 %v406, %v406
    %411 = vrot.lane.b32.xlu0 %v409, 64
    %v412 = vpop.permute.xlu0 %411
    %v414 = vsel %vm52, %v412, 0
    %416 = vmatpush.bf16.msra.mxu0 0
    %417 = vmatpush.bf16.msra.mxu0 0
    %418 = vmatpush.bf16.msra.mxu0 0
    %419 = vmatpush.bf16.msra.mxu0 0
    %420 = vmatpush.bf16.msra.mxu0 0
    %421 = vmatpush.bf16.msra.mxu0 0
    %422 = vmatpush.bf16.msra.mxu0 %v49
    %423 = vmatpush.bf16.msra.mxu0 %v48
    %424 = vmatmul.bf16.gmra.mxu0 %v414
    %v425 = vpop.f32.mrf.mxu0
    %v426 = vadd.f32 0.0, %v425
    %v427 = vpop.f32.mrf.mxu0
    %428 = vdwg.mxu0
    %v429 = vadd.f32 %v408, %v426
    %v430 = vxor.u32 %v429, 2147483648
    %v431 = vmul.f32 %v430, 1.442695
    %v432 = vpow.pop %v431
    %v433 = vadd.f32 %v432, 1.0
    %v434 = vrcp.pop %v433
    %v435 = vmul.f32 %v433, %v434
    %v436 = vsub.f32 1.0, %v435
    %v437 = vmul.f32 %v434, %v436
    %v438 = vadd.f32 %v434, %v437
    %vm439 = vweird.f32 %v433
    %vm440 = vweird.f32 %v434
    %vm441 = vmor %vm439, %vm440
    %v442 = vsel %vm441, %v434, %v438
    %v443 = vand.u32 2147483647, %v433
    %vm444 = vcmp.eq.f32.partialorder %v443, 8.507059e+37
    %v445 = vand.u32 %v433, 2147483648
    %v446 = vor.u32 1.1754944e-38, %v445
    %v447 = vsel %vm444, %v446, %v442
    %v448 = vmul.f32 1.0, %v447
    %v449 = vtanh.pop %v429
    %v450 = vmul.f32 %v448, %v400
    %452 = vrot.lane.b32.xlu0 %v449, 32
    %v453 = vpop.permute.xlu0 %452
    %v455 = vmul.f32 %v448, %v453
    %457 = vrot.lane.b32.xlu0 %v455, 32
    %v458 = vpop.permute.xlu0 %457
    %v460 = vadd.f32 %v450, %v458
    %v461 = vtanh.pop %v460
    %463 = vrot.lane.b32.xlu0 %v461, 32
    %v464 = vpop.permute.xlu0 %463
    %v466 = vmul.f32 %v448, %v464
    %s467 = scalar_lea.vmem [#allocation2], 56
    %v468 = vld [vmem:[%s467] sm:$0xff]
    %v469 = vpack.c.bf16 %v466, %v466
    %471 = vrot.lane.b32.xlu0 %v469, 64
    %v472 = vpop.permute.xlu0 %471
    %v474 = vsel %vm52, %v472, 0
    %476 = vmatpush.bf16.msra.mxu0 0
    %477 = vmatpush.bf16.msra.mxu0 0
    %478 = vmatpush.bf16.msra.mxu0 0
    %479 = vmatpush.bf16.msra.mxu0 0
    %480 = vmatpush.bf16.msra.mxu0 0
    %481 = vmatpush.bf16.msra.mxu0 0
    %482 = vmatpush.bf16.msra.mxu0 %v49
    %483 = vmatpush.bf16.msra.mxu0 %v48
    %484 = vmatmul.bf16.gmra.mxu0 %v474
    %v485 = vpop.f32.mrf.mxu0
    %v486 = vadd.f32 0.0, %v485
    %v487 = vpop.f32.mrf.mxu0
    %488 = vdwg.mxu0
    %v489 = vadd.f32 %v468, %v486
    %v490 = vxor.u32 %v489, 2147483648
    %v491 = vmul.f32 %v490, 1.442695
    %v492 = vpow.pop %v491
    %v493 = vadd.f32 %v492, 1.0
    %v494 = vrcp.pop %v493
    %v495 = vmul.f32 %v493, %v494
    %v496 = vsub.f32 1.0, %v495
    %v497 = vmul.f32 %v494, %v496
    %v498 = vadd.f32 %v494, %v497
    %vm499 = vweird.f32 %v493
    %vm500 = vweird.f32 %v494
    %vm501 = vmor %vm499, %vm500
    %v502 = vsel %vm501, %v494, %v498
    %v503 = vand.u32 2147483647, %v493
    %vm504 = vcmp.eq.f32.partialorder %v503, 8.507059e+37
    %v505 = vand.u32 %v493, 2147483648
    %v506 = vor.u32 1.1754944e-38, %v505
    %v507 = vsel %vm504, %v506, %v502
    %v508 = vmul.f32 1.0, %v507
    %v509 = vtanh.pop %v489
    %v510 = vmul.f32 %v508, %v460
    %512 = vrot.lane.b32.xlu0 %v509, 32
    %v513 = vpop.permute.xlu0 %512
    %v515 = vmul.f32 %v508, %v513
    %517 = vrot.lane.b32.xlu0 %v515, 32
    %v518 = vpop.permute.xlu0 %517
    %v520 = vadd.f32 %v510, %v518
    %v521 = vtanh.pop %v520
    %523 = vrot.lane.b32.xlu0 %v521, 32
    %v524 = vpop.permute.xlu0 %523
    %v526 = vmul.f32 %v508, %v524
    %v527 = vpack.c.bf16 %v526, %v526
    %v528 = vld [vmem:[%s2] sm:$0xf]
    %v529 = vld [vmem:[%s2 + $0x4] sm:$0xf]
    %v530 = vld [vmem:[%s2 + $0x8] sm:$0xf]
    %v531 = vld [vmem:[%s2 + $0xc] sm:$0xf]
    %v532 = vld [vmem:[%s3] sm:$0x1]
    %v534 = vperm.slane %v532, 0
    %537 = vrot.lane.b32.xlu0 %v527, 64
    %v538 = vpop.permute.xlu0 %537
    %v543 = vunpack.c.l.b16 %v528
    %v544 = vunpack.c.l.b16 %v529
    %v545 = vunpack.c.l.b16 %v530
    %v546 = vunpack.c.l.b16 %v531
    %v547 = vpack.c.b16 %v544, %v543
    %v548 = vpack.c.b16 %v546, %v545
    %v552 = vsel %vm52, %v538, 0
    %554 = vmatpush.bf16.msra.mxu0 0
    %555 = vmatpush.bf16.msra.mxu0 0
    %556 = vmatpush.bf16.msra.mxu0 0
    %557 = vmatpush.bf16.msra.mxu0 0
    %558 = vmatpush.bf16.msra.mxu0 0
    %559 = vmatpush.bf16.msra.mxu0 0
    %560 = vmatpush.bf16.msra.mxu0 %v548
    %561 = vmatpush.bf16.msra.mxu0 %v547
    %562 = vmatmul.bf16.gmra.mxu0 %v552
    %v563 = vpop.f32.mrf.mxu0
    %v564 = vadd.f32 %v534, %v563
    %v565 = vpop.f32.mrf.mxu0
    %566 = vdwg.mxu0
    %vm567 = vcmask 64512
    %568 = vst.msk [vmem:[#allocation5] sm:$0xff] %vm567, %v564
    // Predicated region
    $region22: #{tpu_custom_call.1} parent=1 // pred_check
      _
    $region23: #{tpu_custom_call.1} parent=1 // pred_check_branch
      %570 = sbr.rel (0) target = $region25
    $region24: #{tpu_custom_call.1} parent=1 // pred_region
      %572 = vsyncadd [#allocation4], 0
      %s574 = sshll.u32 [#allocation5], 4
      %s575 = int_to_ptr.vmem [resolvable:$true] %s574
      %s576 = sshll.u32 %s4, 4
      %s577 = int_to_ptr.hbm [resolvable:$true] %s576
      %579 = dma.vmem_to_hbm [thread:$0]  %s575, 128, %s577, [#allocation4]
    $region25: #{tpu_custom_call.1} parent=1 // pred_fallthru
      _
    // Predicated region
    $region26: #{tpu_custom_call.1} parent=1 // pred_check
      _
    $region27: #{tpu_custom_call.1} parent=1 // pred_check_branch
      %581 = sbr.rel (0) target = $region29
    $region28: #{tpu_custom_call.1} parent=1 // pred_region
      %583 = dma.done [#allocation4], 128
    $region29: #{tpu_custom_call.1} parent=1 // pred_fallthru
      _
    %584 = vsyncpa [#allocation3], 1
    %585 = vsyncpa [#allocation4], 1

</llo_original>
